<compile_context>
chip_gen: v7x
topology: tpu7x:2x2x1
jax: 0.10.0
libtpu: 0.0.40
codegen_flags: <defaults>
</compile_context>

<pallas_src>
import functools

import jax
import jax.numpy as jnp
from jax.experimental import pallas as pl
from jax.experimental.pallas import tpu as pltpu

DIMS = (12, 32, 64, 32, 16, 8, 2)   # layer widths of the PyTorch module
N_LAYERS = len(DIMS) - 1            # 6 Linear layers
PAD = 64                            # max hidden width; hidden layers padded to this
IN_PAD = 16                         # input features (12) padded to sublane multiple


def _round_up(n, m):
    return ((n + m - 1) // m) * m


def _mlp_kernel(x_ref, w0_ref, w_ref, b_ref, o_ref, *, matmul_dtype):
    """One batch tile of the MLP, feature-major layout.

    x_ref:  (IN_PAD, TILE_B)          zero-padded input features (matmul_dtype)
    w0_ref: (PAD, IN_PAD)             zero-padded first-layer weight (out, in) (matmul_dtype)
    w_ref:  (N_LAYERS-1, PAD, PAD)    zero-padded weights for layers 1..5 (matmul_dtype)
    b_ref:  (N_LAYERS, PAD, 1)        zero-padded biases (float32)
    o_ref:  (2, TILE_B)               softmax probabilities (float32)
    """
    # Layer 0: Linear (MXU, f32 accumulate) + bias + ReLU.
    z = jnp.dot(w0_ref[...], x_ref[...], preferred_element_type=jnp.float32) + b_ref[0]
    h = jnp.maximum(z, 0.0).astype(matmul_dtype)

    # Hidden layers 1..4: Linear + bias + ReLU.
    for i in range(1, N_LAYERS - 1):
        z = jnp.dot(w_ref[i - 1], h, preferred_element_type=jnp.float32) + b_ref[i]
        h = jnp.maximum(z, 0.0).astype(matmul_dtype)

    # Final linear layer (no ReLU). Only rows 0 and 1 carry real logits.
    logits = (jnp.dot(w_ref[N_LAYERS - 2], h, preferred_element_type=jnp.float32)
              + b_ref[N_LAYERS - 1])

    # 2-class softmax == sigmoid of the logit difference (numerically stable,
    # no cross-lane reductions needed).
    d = logits[0:1, :] - logits[1:2, :]
    approx = matmul_dtype != jnp.float32  # keep exact reciprocal in f32-check mode
    p0 = pl.reciprocal(1.0 + jnp.exp(-d), approx=approx)
    o_ref[0:1, :] = p0
    o_ref[1:2, :] = 1.0 - p0


def neural_nets_forward(x, params, *, tile_b=1024, matmul_dtype=jnp.bfloat16):
    """Forward pass of NeuralNets.

    x:      (B, ...) float32, flattened to (B, 12) (nn.Flatten).
    params: list of 6 (W, b) with W shape (out, in) (PyTorch layout), b shape (out,).
    Returns (B, 2) float32 softmax probabilities.
    """
    x = x.reshape(x.shape[0], -1).astype(jnp.float32)
    B, F = x.shape
    assert F == DIMS[0], f"expected {DIMS[0]} features after flatten, got {F}"

    # Pack weights / biases into zero-padded slabs (cheap one-off XLA ops).
    w0_slab = jnp.zeros((PAD, IN_PAD), jnp.float32)
    w0_slab = w0_slab.at[:DIMS[1], :DIMS[0]].set(params[0][0])
    w_slab = jnp.zeros((N_LAYERS - 1, PAD, PAD), jnp.float32)
    b_slab = jnp.zeros((N_LAYERS, PAD, 1), jnp.float32)
    for i, (w, b) in enumerate(params):
        out_d, in_d = w.shape
        if i > 0:
            w_slab = w_slab.at[i - 1, :out_d, :in_d].set(w)
        b_slab = b_slab.at[i, :out_d, 0].set(b.reshape(-1))
    w0_slab = w0_slab.astype(matmul_dtype)
    w_slab = w_slab.astype(matmul_dtype)

    # Feature-major, zero-padded input: (IN_PAD, B_pad); batch is the lane dimension.
    tile_b = _round_up(tile_b, 128)
    tile_b = min(tile_b, _round_up(B, 128))
    b_pad = _round_up(B, tile_b)
    x_t = (jnp.zeros((IN_PAD, b_pad), matmul_dtype)
           .at[:F, :B].set(x.T.astype(matmul_dtype)))

    grid = (b_pad // tile_b,)
    kernel = functools.partial(_mlp_kernel, matmul_dtype=matmul_dtype)

    out_t = pl.pallas_call(
        kernel,
        out_shape=jax.ShapeDtypeStruct((2, b_pad), jnp.float32),
        grid_spec=pl.GridSpec(
            grid=grid,
            in_specs=[
                pl.BlockSpec((IN_PAD, tile_b), lambda i: (0, i)),             # x tile
                pl.BlockSpec((PAD, IN_PAD), lambda i: (0, 0)),                # layer-0 weight (resident)
                pl.BlockSpec((N_LAYERS - 1, PAD, PAD), lambda i: (0, 0, 0)),  # weights 1..5 (resident)
                pl.BlockSpec((N_LAYERS, PAD, 1), lambda i: (0, 0, 0)),        # biases (resident)
            ],
            out_specs=pl.BlockSpec((2, tile_b), lambda i: (0, i)),            # lane-dense output
        ),
        compiler_params=pltpu.CompilerParams(
            dimension_semantics=("parallel",)),  # v7x: shard batch tiles across 2 TCs
    )(x_t, w0_slab, w_slab, b_slab)

    return out_t[:, :B].T  # (B, 2)


def init_params(key):
    """Deterministic PyTorch-style init (U(-1/sqrt(fan_in), 1/sqrt(fan_in)))."""
    params = []
    for i in range(N_LAYERS):
        key, kw, kb = jax.random.split(key, 3)
        fan_in, fan_out = DIMS[i], DIMS[i + 1]
        bound = float(fan_in) ** -0.5
        w = jax.random.uniform(kw, (fan_out, fan_in), jnp.float32, -bound, bound)
        b = jax.random.uniform(kb, (fan_out,), jnp.float32, -bound, bound)
        params.append((w, b))
    return params


def reference_forward(x, params):
    """Pure-JAX f32 reference matching the PyTorch module."""
    h = x.reshape(x.shape[0], -1)
    for i, (w, b) in enumerate(params):
        h = jnp.dot(h, w.T, precision=jax.lax.Precision.HIGHEST) + b
        if i < len(params) - 1:
            h = jnp.maximum(h, 0.0)
    return jax.nn.softmax(h, axis=-1)


if __name__ == "__main__":
    key = jax.random.PRNGKey(0)
    kp, kx = jax.random.split(key)
    params = init_params(kp)

    # Input consistent with nn.Flatten(): (B, 3, 4) -> (B, 12)
    B = 8
    x_raw = jax.random.normal(kx, (B, 3, 4), dtype=jnp.float32)

    ref = reference_forward(x_raw, params)

    # Exact-semantics check: f32 matmul operands.
    out_f32 = jax.block_until_ready(
        neural_nets_forward(x_raw, params, matmul_dtype=jnp.float32))
    assert out_f32.shape == (B, 2)
    assert jnp.allclose(out_f32, ref, atol=1e-4, rtol=1e-4), "f32 mode mismatch vs reference"

    # Default fast path: bf16 matmul operands (MXU-native), f32 elsewhere.
    out = jax.block_until_ready(neural_nets_forward(x_raw, params))
    assert out.shape == (B, 2)
    assert jnp.allclose(out, ref, atol=3e-2, rtol=0.0), "bf16 mode mismatch vs reference"
    assert jnp.allclose(jnp.sum(out, axis=-1), 1.0, atol=1e-5), "softmax rows must sum to 1"

    print("KERNEL_OK")
</pallas_src>

<mosaic_0001>
module attributes {stable_mosaic.version = 11 : i64} {
  func.func @_mlp_kernel(%arg0: i32, %arg1: memref<16x128xf32, #tpu.memory_space<vmem>>, %arg2: memref<64x16xf32, #tpu.memory_space<vmem>>, %arg3: memref<5x64x64xf32, #tpu.memory_space<vmem>>, %arg4: memref<6x64x1xf32, #tpu.memory_space<vmem>>, %arg5: memref<2x128xf32, #tpu.memory_space<vmem>>) attributes {dimension_semantics = [#tpu.dimension_semantics<parallel>], iteration_bounds = array<i64: 1>, scalar_prefetch = 0 : i64, scratch_operands = 0 : i64, tpu.core_type = #tpu.core_type<tc>, window_params = [{transform_indices = @transform_0, window_bounds = array<i64: 16, 128>}, {pipeline_mode = #tpu.pipeline_mode<synchronous>, transform_indices = @transform_1, window_bounds = array<i64: 64, 16>}, {pipeline_mode = #tpu.pipeline_mode<synchronous>, transform_indices = @transform_2, window_bounds = array<i64: 5, 64, 64>}, {pipeline_mode = #tpu.pipeline_mode<synchronous>, transform_indices = @transform_3, window_bounds = array<i64: 6, 64, 1>}, {transform_indices = @transform_4, window_bounds = array<i64: 2, 128>}]} {
    %c0 = arith.constant 0 : index
    %c0_0 = arith.constant 0 : index
    %0 = vector.load %arg2[%c0, %c0_0] : memref<64x16xf32, #tpu.memory_space<vmem>>, vector<64x16xf32>
    %c0_1 = arith.constant 0 : index
    %c0_2 = arith.constant 0 : index
    %1 = vector.load %arg1[%c0_1, %c0_2] : memref<16x128xf32, #tpu.memory_space<vmem>>, vector<16x128xf32>
    %cst = arith.constant dense<0.000000e+00> : vector<64x128xf32>
    %2 = tpu.matmul %0, %1, %cst {dimension_numbers = #tpu.dot_dimension_numbers<[1], [0], [0], [1], [0, 0, 1, 1], [], []>} : vector<64x16xf32>, vector<16x128xf32>, vector<64x128xf32> -> vector<64x128xf32>
    %c0_3 = arith.constant 0 : index
    %c0_4 = arith.constant 0 : index
    %c0_5 = arith.constant 0 : index
    %3 = vector.load %arg4[%c0_3, %c0_4, %c0_5] : memref<6x64x1xf32, #tpu.memory_space<vmem>>, vector<1x64x1xf32>
    %4 = vector.shape_cast %3 : vector<1x64x1xf32> to vector<64x1xf32>
    %5 = vector.broadcast %4 : vector<64x1xf32> to vector<64x128xf32>
    %6 = arith.addf %2, %5 : vector<64x128xf32>
    %cst_6 = arith.constant 0.000000e+00 : f32
    %7 = vector.broadcast %cst_6 : f32 to vector<64x128xf32>
    %8 = arith.maximumf %6, %7 : vector<64x128xf32>
    %c0_7 = arith.constant 0 : index
    %c0_8 = arith.constant 0 : index
    %c0_9 = arith.constant 0 : index
    %9 = vector.load %arg3[%c0_7, %c0_8, %c0_9] : memref<5x64x64xf32, #tpu.memory_space<vmem>>, vector<1x64x64xf32>
    %10 = vector.shape_cast %9 : vector<1x64x64xf32> to vector<64x64xf32>
    %cst_10 = arith.constant dense<0.000000e+00> : vector<64x128xf32>
    %11 = tpu.matmul %10, %8, %cst_10 {dimension_numbers = #tpu.dot_dimension_numbers<[1], [0], [0], [1], [0, 0, 1, 1], [], []>} : vector<64x64xf32>, vector<64x128xf32>, vector<64x128xf32> -> vector<64x128xf32>
    %c1 = arith.constant 1 : index
    %c0_11 = arith.constant 0 : index
    %c0_12 = arith.constant 0 : index
    %12 = vector.load %arg4[%c1, %c0_11, %c0_12] : memref<6x64x1xf32, #tpu.memory_space<vmem>>, vector<1x64x1xf32>
    %13 = vector.shape_cast %12 : vector<1x64x1xf32> to vector<64x1xf32>
    %14 = vector.broadcast %13 : vector<64x1xf32> to vector<64x128xf32>
    %15 = arith.addf %11, %14 : vector<64x128xf32>
    %cst_13 = arith.constant 0.000000e+00 : f32
    %16 = vector.broadcast %cst_13 : f32 to vector<64x128xf32>
    %17 = arith.maximumf %15, %16 : vector<64x128xf32>
    %c1_14 = arith.constant 1 : index
    %c0_15 = arith.constant 0 : index
    %c0_16 = arith.constant 0 : index
    %18 = vector.load %arg3[%c1_14, %c0_15, %c0_16] : memref<5x64x64xf32, #tpu.memory_space<vmem>>, vector<1x64x64xf32>
    %19 = vector.shape_cast %18 : vector<1x64x64xf32> to vector<64x64xf32>
    %cst_17 = arith.constant dense<0.000000e+00> : vector<64x128xf32>
    %20 = tpu.matmul %19, %17, %cst_17 {dimension_numbers = #tpu.dot_dimension_numbers<[1], [0], [0], [1], [0, 0, 1, 1], [], []>} : vector<64x64xf32>, vector<64x128xf32>, vector<64x128xf32> -> vector<64x128xf32>
    %c2 = arith.constant 2 : index
    %c0_18 = arith.constant 0 : index
    %c0_19 = arith.constant 0 : index
    %21 = vector.load %arg4[%c2, %c0_18, %c0_19] : memref<6x64x1xf32, #tpu.memory_space<vmem>>, vector<1x64x1xf32>
    %22 = vector.shape_cast %21 : vector<1x64x1xf32> to vector<64x1xf32>
    %23 = vector.broadcast %22 : vector<64x1xf32> to vector<64x128xf32>
    %24 = arith.addf %20, %23 : vector<64x128xf32>
    %cst_20 = arith.constant 0.000000e+00 : f32
    %25 = vector.broadcast %cst_20 : f32 to vector<64x128xf32>
    %26 = arith.maximumf %24, %25 : vector<64x128xf32>
    %c2_21 = arith.constant 2 : index
    %c0_22 = arith.constant 0 : index
    %c0_23 = arith.constant 0 : index
    %27 = vector.load %arg3[%c2_21, %c0_22, %c0_23] : memref<5x64x64xf32, #tpu.memory_space<vmem>>, vector<1x64x64xf32>
    %28 = vector.shape_cast %27 : vector<1x64x64xf32> to vector<64x64xf32>
    %cst_24 = arith.constant dense<0.000000e+00> : vector<64x128xf32>
    %29 = tpu.matmul %28, %26, %cst_24 {dimension_numbers = #tpu.dot_dimension_numbers<[1], [0], [0], [1], [0, 0, 1, 1], [], []>} : vector<64x64xf32>, vector<64x128xf32>, vector<64x128xf32> -> vector<64x128xf32>
    %c3 = arith.constant 3 : index
    %c0_25 = arith.constant 0 : index
    %c0_26 = arith.constant 0 : index
    %30 = vector.load %arg4[%c3, %c0_25, %c0_26] : memref<6x64x1xf32, #tpu.memory_space<vmem>>, vector<1x64x1xf32>
    %31 = vector.shape_cast %30 : vector<1x64x1xf32> to vector<64x1xf32>
    %32 = vector.broadcast %31 : vector<64x1xf32> to vector<64x128xf32>
    %33 = arith.addf %29, %32 : vector<64x128xf32>
    %cst_27 = arith.constant 0.000000e+00 : f32
    %34 = vector.broadcast %cst_27 : f32 to vector<64x128xf32>
    %35 = arith.maximumf %33, %34 : vector<64x128xf32>
    %c3_28 = arith.constant 3 : index
    %c0_29 = arith.constant 0 : index
    %c0_30 = arith.constant 0 : index
    %36 = vector.load %arg3[%c3_28, %c0_29, %c0_30] : memref<5x64x64xf32, #tpu.memory_space<vmem>>, vector<1x64x64xf32>
    %37 = vector.shape_cast %36 : vector<1x64x64xf32> to vector<64x64xf32>
    %cst_31 = arith.constant dense<0.000000e+00> : vector<64x128xf32>
    %38 = tpu.matmul %37, %35, %cst_31 {dimension_numbers = #tpu.dot_dimension_numbers<[1], [0], [0], [1], [0, 0, 1, 1], [], []>} : vector<64x64xf32>, vector<64x128xf32>, vector<64x128xf32> -> vector<64x128xf32>
    %c4 = arith.constant 4 : index
    %c0_32 = arith.constant 0 : index
    %c0_33 = arith.constant 0 : index
    %39 = vector.load %arg4[%c4, %c0_32, %c0_33] : memref<6x64x1xf32, #tpu.memory_space<vmem>>, vector<1x64x1xf32>
    %40 = vector.shape_cast %39 : vector<1x64x1xf32> to vector<64x1xf32>
    %41 = vector.broadcast %40 : vector<64x1xf32> to vector<64x128xf32>
    %42 = arith.addf %38, %41 : vector<64x128xf32>
    %cst_34 = arith.constant 0.000000e+00 : f32
    %43 = vector.broadcast %cst_34 : f32 to vector<64x128xf32>
    %44 = arith.maximumf %42, %43 : vector<64x128xf32>
    %c4_35 = arith.constant 4 : index
    %c0_36 = arith.constant 0 : index
    %c0_37 = arith.constant 0 : index
    %45 = vector.load %arg3[%c4_35, %c0_36, %c0_37] : memref<5x64x64xf32, #tpu.memory_space<vmem>>, vector<1x64x64xf32>
    %46 = vector.shape_cast %45 : vector<1x64x64xf32> to vector<64x64xf32>
    %cst_38 = arith.constant dense<0.000000e+00> : vector<64x128xf32>
    %47 = tpu.matmul %46, %44, %cst_38 {dimension_numbers = #tpu.dot_dimension_numbers<[1], [0], [0], [1], [0, 0, 1, 1], [], []>} : vector<64x64xf32>, vector<64x128xf32>, vector<64x128xf32> -> vector<64x128xf32>
    %c5 = arith.constant 5 : index
    %c0_39 = arith.constant 0 : index
    %c0_40 = arith.constant 0 : index
    %48 = vector.load %arg4[%c5, %c0_39, %c0_40] : memref<6x64x1xf32, #tpu.memory_space<vmem>>, vector<1x64x1xf32>
    %49 = vector.shape_cast %48 : vector<1x64x1xf32> to vector<64x1xf32>
    %50 = vector.broadcast %49 : vector<64x1xf32> to vector<64x128xf32>
    %51 = arith.addf %47, %50 : vector<64x128xf32>
    %52 = vector.extract_strided_slice %51 {offsets = [0, 0], sizes = [1, 128], strides = [1, 1]} : vector<64x128xf32> to vector<1x128xf32>
    %53 = vector.extract_strided_slice %51 {offsets = [1, 0], sizes = [1, 128], strides = [1, 1]} : vector<64x128xf32> to vector<1x128xf32>
    %54 = arith.subf %52, %53 : vector<1x128xf32>
    %cst_41 = arith.constant 0.000000e+00 : f32
    %55 = vector.broadcast %cst_41 : f32 to vector<1x128xf32>
    %56 = arith.subf %55, %54 : vector<1x128xf32>
    %57 = math.exp %56 : vector<1x128xf32>
    %cst_42 = arith.constant 1.000000e+00 : f32
    %58 = vector.broadcast %cst_42 : f32 to vector<1x128xf32>
    %59 = arith.addf %58, %57 : vector<1x128xf32>
    %60 = tpu.reciprocal %59 : vector<1x128xf32> -> vector<1x128xf32>
    %c0_43 = arith.constant 0 : index
    %c0_44 = arith.constant 0 : index
    %61 = vector.load %arg5[%c0_43, %c0_44] : memref<2x128xf32, #tpu.memory_space<vmem>>, vector<1x128xf32>
    tpu.vector_store %arg5[%c0_43, %c0_44], %60 {strides = array<i32>} : memref<2x128xf32, #tpu.memory_space<vmem>>, vector<1x128xf32>,
    %cst_45 = arith.constant 1.000000e+00 : f32
    %62 = vector.broadcast %cst_45 : f32 to vector<1x128xf32>
    %63 = arith.subf %62, %60 : vector<1x128xf32>
    %c1_46 = arith.constant 1 : index
    %c0_47 = arith.constant 0 : index
    %64 = vector.load %arg5[%c1_46, %c0_47] : memref<2x128xf32, #tpu.memory_space<vmem>>, vector<1x128xf32>
    tpu.vector_store %arg5[%c1_46, %c0_47], %63 {strides = array<i32>} : memref<2x128xf32, #tpu.memory_space<vmem>>, vector<1x128xf32>,
    return
  }
  func.func @transform_0(%arg0: i32) -> (i32, i32) {
    %c0_i32 = arith.constant 0 : i32
    %c0_i32_0 = arith.constant 0 : i32
    return %c0_i32, %arg0 : i32, i32
  }
  func.func @transform_1(%arg0: i32) -> (i32, i32) {
    %c0_i32 = arith.constant 0 : i32
    %c0_i32_0 = arith.constant 0 : i32
    %c0_i32_1 = arith.constant 0 : i32
    return %c0_i32, %c0_i32_0 : i32, i32
  }
  func.func @transform_2(%arg0: i32) -> (i32, i32, i32) {
    %c0_i32 = arith.constant 0 : i32
    %c0_i32_0 = arith.constant 0 : i32
    %c0_i32_1 = arith.constant 0 : i32
    %c0_i32_2 = arith.constant 0 : i32
    return %c0_i32, %c0_i32_0, %c0_i32_1 : i32, i32, i32
  }
  func.func @transform_3(%arg0: i32) -> (i32, i32, i32) {
    %c0_i32 = arith.constant 0 : i32
    %c0_i32_0 = arith.constant 0 : i32
    %c0_i32_1 = arith.constant 0 : i32
    %c0_i32_2 = arith.constant 0 : i32
    return %c0_i32, %c0_i32_0, %c0_i32_1 : i32, i32, i32
  }
  func.func @transform_4(%arg0: i32) -> (i32, i32) {
    %c0_i32 = arith.constant 0 : i32
    %c0_i32_0 = arith.constant 0 : i32
    return %c0_i32, %arg0 : i32, i32
  }
}

</mosaic_0001>

<llo_original>
// kernel: tpu_custom_call.1
$region0: #{tpu_custom_call.1}
  #allocation0 [shape = 'u32[]', space=smem, size = 0x4, offset = 0x4, fixed_abs, tag = 'smem constant byte address 0x4 - core index']
  #allocation1 [shape = 'u32[144,128]{1,0:T(1,128)}', space=vmem, size = 0x12000, scoped, tag = 'internal scratch']
  %s0 = inlined_call_operand.vmem [shape: f32[16,128], index: 0, kind: input, shape index: {}]
  %s1 = inlined_call_operand.vmem [shape: f32[64,16], index: 1, kind: input, shape index: {}]
  %s2 = inlined_call_operand.vmem [shape: f32[5,64,64], index: 2, kind: input, shape index: {}]
  %s3 = inlined_call_operand.vmem [shape: f32[6,64,1], index: 3, kind: input, shape index: {}]
  %s4 = inlined_call_operand.hbm [shape: f32[2,128], index: 4, kind: output, shape index: {}]
  %s5 = sld [smem:[#allocation0]]
  $region26: #{tpu_custom_call.1} parent=0
    _
  %s7 = ssub.s32 1, %s5
  %s8 = scalar_select 0, %s7, %s5
  $region1: #{tpu_custom_call.1} parent=0
    #allocation2 [shape = 'u8[1024]{0}', space=vmem, size = 0x400, scoped, tag = 'output window, operand 0, single buffered']
    #allocation3 [shape = 's32[1]{0}', space=sflag, size = 0x4, scoped, tag = 'scoped memory for tpu_custom_call.1']
    %9 = vsyncpa [#allocation3], 0
    // Predicated region
    $region2: #{tpu_custom_call.1} parent=1 // pred_check
      _
    $region3: #{tpu_custom_call.1} parent=1 // pred_check_branch
      %11 = sbr.rel (0) target = $region5
    $region4: #{tpu_custom_call.1} parent=1 // pred_region
      _
    $region5: #{tpu_custom_call.1} parent=1 // pred_fallthru
      _
    // Predicated region
    $region6: #{tpu_custom_call.1} parent=1 // pred_check
      _
    $region7: #{tpu_custom_call.1} parent=1 // pred_check_branch
      %13 = sbr.rel (0) target = $region9
    $region8: #{tpu_custom_call.1} parent=1 // pred_region
      _
    $region9: #{tpu_custom_call.1} parent=1 // pred_fallthru
      _
    // Predicated region
    $region10: #{tpu_custom_call.1} parent=1 // pred_check
      _
    $region11: #{tpu_custom_call.1} parent=1 // pred_check_branch
      %15 = sbr.rel (0) target = $region13
    $region12: #{tpu_custom_call.1} parent=1 // pred_region
      _
    $region13: #{tpu_custom_call.1} parent=1 // pred_fallthru
      _
    // Predicated region
    $region14: #{tpu_custom_call.1} parent=1 // pred_check
      _
    $region15: #{tpu_custom_call.1} parent=1 // pred_check_branch
      %17 = sbr.rel (0) target = $region17
    $region16: #{tpu_custom_call.1} parent=1 // pred_region
      _
    $region17: #{tpu_custom_call.1} parent=1 // pred_fallthru
      _
    %v18 = vld [vmem:[%s1] sm:$0xff]
    %v19 = vld [vmem:[%s1 + $0x8] sm:$0xff]
    %v20 = vld [vmem:[%s1 + $0x10] sm:$0xff]
    %v21 = vld [vmem:[%s1 + $0x18] sm:$0xff]
    %v22 = vld [vmem:[%s1 + $0x20] sm:$0xff]
    %v23 = vld [vmem:[%s1 + $0x28] sm:$0xff]
    %v24 = vld [vmem:[%s1 + $0x30] sm:$0xff]
    %v25 = vld [vmem:[%s1 + $0x38] sm:$0xff]
    %v26 = vld [vmem:[%s0] sm:$0xff]
    %v27 = vld [vmem:[%s0 + $0x8] sm:$0xff]
    %v28 = vld [vmem:[%s3] sm:$0xff]
    %v29 = vld [vmem:[%s3 + $0x8] sm:$0xff]
    %v30 = vld [vmem:[%s3 + $0x10] sm:$0xff]
    %v31 = vld [vmem:[%s3 + $0x18] sm:$0xff]
    %v32 = vld [vmem:[%s3 + $0x20] sm:$0xff]
    %v33 = vld [vmem:[%s3 + $0x28] sm:$0xff]
    %v34 = vld [vmem:[%s3 + $0x30] sm:$0xff]
    %v35 = vld [vmem:[%s3 + $0x38] sm:$0xff]
    %37 = vset.pattern.permute.xlu0 0
    %38 = vperm.xlu0 %37, %v28
    %v39 = vpop.permute.xlu0 %38
    %42 = vset.pattern.permute.xlu0 0
    %43 = vperm.xlu0 %42, %v29
    %v44 = vpop.permute.xlu0 %43
    %47 = vset.pattern.permute.xlu0 0
    %48 = vperm.xlu0 %47, %v30
    %v49 = vpop.permute.xlu0 %48
    %52 = vset.pattern.permute.xlu0 0
    %53 = vperm.xlu0 %52, %v31
    %v54 = vpop.permute.xlu0 %53
    %57 = vset.pattern.permute.xlu0 0
    %58 = vperm.xlu0 %57, %v32
    %v59 = vpop.permute.xlu0 %58
    %62 = vset.pattern.permute.xlu0 0
    %63 = vperm.xlu0 %62, %v33
    %v64 = vpop.permute.xlu0 %63
    %67 = vset.pattern.permute.xlu0 0
    %68 = vperm.xlu0 %67, %v34
    %v69 = vpop.permute.xlu0 %68
    %72 = vset.pattern.permute.xlu0 0
    %73 = vperm.xlu0 %72, %v35
    %v74 = vpop.permute.xlu0 %73
    %vm76 = vcmask 130048
    %v78 = vsel %vm76, %v18, 0
    %v81 = vsel %vm76, %v19, 0
    %v84 = vsel %vm76, %v20, 0
    %v87 = vsel %vm76, %v21, 0
    %v90 = vsel %vm76, %v22, 0
    %v93 = vsel %vm76, %v23, 0
    %v96 = vsel %vm76, %v24, 0
    %v99 = vsel %vm76, %v25, 0
    %101 = vmatprep.subr.mxu0 0.0
    %102 = vmatpush1.msra.mxu0 %v26
    %103 = vmatprep.subr.mxu0 0.0
    %104 = vmatpush1.msra.mxu0 %v27
    %105 = vmatprep.subr.mxu0 0.0
    %106 = vmatpush1.msra.mxu0 0.0
    %107 = vmatprep.subr.mxu0 0.0
    %108 = vmatpush1.msra.mxu0 0.0
    %109 = vmatprep.subr.mxu0 0.0
    %110 = vmatpush1.msra.mxu0 0.0
    %111 = vmatprep.subr.mxu0 0.0
    %112 = vmatpush1.msra.mxu0 0.0
    %113 = vmatprep.subr.mxu0 0.0
    %114 = vmatpush1.msra.mxu0 0.0
    %115 = vmatprep.subr.mxu0 0.0
    %116 = vmatpush1.msra.mxu0 0.0
    %117 = vmatprep.subr.mxu0 0.0
    %118 = vmatpush1.msra.mxu0 0.0
    %119 = vmatprep.subr.mxu0 0.0
    %120 = vmatpush1.msra.mxu0 0.0
    %121 = vmatprep.subr.mxu0 0.0
    %122 = vmatpush1.msra.mxu0 0.0
    %123 = vmatprep.subr.mxu0 0.0
    %124 = vmatpush1.msra.mxu0 0.0
    %125 = vmatprep.subr.mxu0 0.0
    %126 = vmatpush1.msra.mxu0 0.0
    %127 = vmatprep.subr.mxu0 0.0
    %128 = vmatpush1.msra.mxu0 0.0
    %129 = vmatprep.subr.mxu0 0.0
    %130 = vmatpush1.msra.mxu0 0.0
    %131 = vmatprep.subr.mxu0 0.0
    %132 = vmatpush1.msra.mxu0 0.0
    %133 = vmatprep.subr.mxu0 0.0
    %134 = vmatpush1.msra.mxu0 0.0
    %135 = vmatprep.subr.mxu0 0.0
    %136 = vmatpush1.msra.mxu0 0.0
    %137 = vmatprep.subr.mxu0 0.0
    %138 = vmatpush1.msra.mxu0 0.0
    %139 = vmatprep.subr.mxu0 0.0
    %140 = vmatpush1.msra.mxu0 0.0
    %141 = vmatprep.subr.mxu0 0.0
    %142 = vmatpush1.msra.mxu0 0.0
    %143 = vmatprep.subr.mxu0 0.0
    %144 = vmatpush1.msra.mxu0 0.0
    %145 = vmatprep.subr.mxu0 0.0
    %146 = vmatpush1.msra.mxu0 0.0
    %147 = vmatprep.subr.mxu0 0.0
    %148 = vmatpush1.msra.mxu0 0.0
    %149 = vmatprep.subr.mxu0 0.0
    %150 = vmatpush1.msra.mxu0 0.0
    %151 = vmatprep.subr.mxu0 0.0
    %152 = vmatpush1.msra.mxu0 0.0
    %153 = vmatprep.subr.mxu0 0.0
    %154 = vmatpush1.msra.mxu0 0.0
    %155 = vmatprep.subr.mxu0 0.0
    %156 = vmatpush1.msra.mxu0 0.0
    %157 = vmatprep.subr.mxu0 0.0
    %158 = vmatpush1.msra.mxu0 0.0
    %159 = vmatprep.subr.mxu0 0.0
    %160 = vmatpush1.msra.mxu0 0.0
    %161 = vmatprep.subr.mxu0 0.0
    %162 = vmatpush1.msra.mxu0 0.0
    %163 = vmatprep.subr.mxu0 0.0
    %164 = vmatpush1.msra.mxu0 0.0
    %165 = vmatprep.mubr.f32.mxu0 0.0
    %166 = vmatmul.mubr.f32.gmra.mrb[0].mxu0 %v78
    %v167 = vpop.f32.mrb[0].mxu0
    %v168 = vadd.f32 %v39, %v167
    %v169 = vpop.f32.mrb[0].mxu0
    %170 = vmatprep.mubr.f32.mxu0 0.0
    %171 = vmatmul.mubr.f32.gmra.mrb[0].mxu0 %v81
    %v172 = vpop.f32.mrb[0].mxu0
    %v173 = vadd.f32 %v44, %v172
    %v174 = vpop.f32.mrb[0].mxu0
    %175 = vmatprep.mubr.f32.mxu0 0.0
    %176 = vmatmul.mubr.f32.gmra.mrb[0].mxu0 %v84
    %v177 = vpop.f32.mrb[0].mxu0
    %v178 = vadd.f32 %v49, %v177
    %v179 = vpop.f32.mrb[0].mxu0
    %180 = vmatprep.mubr.f32.mxu0 0.0
    %181 = vmatmul.mubr.f32.gmra.mrb[0].mxu0 %v87
    %v182 = vpop.f32.mrb[0].mxu0
    %v183 = vadd.f32 %v54, %v182
    %v184 = vpop.f32.mrb[0].mxu0
    %185 = vmatprep.mubr.f32.mxu0 0.0
    %186 = vmatmul.mubr.f32.gmra.mrb[0].mxu0 %v90
    %v187 = vpop.f32.mrb[0].mxu0
    %v188 = vadd.f32 %v59, %v187
    %v189 = vpop.f32.mrb[0].mxu0
    %190 = vmatprep.mubr.f32.mxu0 0.0
    %191 = vmatmul.mubr.f32.gmra.mrb[0].mxu0 %v93
    %v192 = vpop.f32.mrb[0].mxu0
    %v193 = vadd.f32 %v64, %v192
    %v194 = vpop.f32.mrb[0].mxu0
    %195 = vmatprep.mubr.f32.mxu0 0.0
    %196 = vmatmul.mubr.f32.gmra.mrb[0].mxu0 %v96
    %v197 = vpop.f32.mrb[0].mxu0
    %v198 = vadd.f32 %v69, %v197
    %v199 = vpop.f32.mrb[0].mxu0
    %200 = vmatprep.mubr.f32.mxu0 0.0
    %201 = vmatmul.mubr.f32.gmra.mrb[0].mxu0 %v99
    %v202 = vpop.f32.mrb[0].mxu0
    %v203 = vadd.f32 %v74, %v202
    %v204 = vpop.f32.mrb[0].mxu0
    %205 = vdwg.mxu0
    %v206 = vmax.f32 %v168, 0.0
    %v207 = vmax.f32 %v173, 0.0
    %v208 = vmax.f32 %v178, 0.0
    %v209 = vmax.f32 %v183, 0.0
    %v210 = vmax.f32 %v188, 0.0
    %v211 = vmax.f32 %v193, 0.0
    %v212 = vmax.f32 %v198, 0.0
    %v213 = vmax.f32 %v203, 0.0
    %v214 = vld [vmem:[%s2] sm:$0xff]
    %v215 = vld [vmem:[%s2 + $0x8] sm:$0xff]
    %v216 = vld [vmem:[%s2 + $0x10] sm:$0xff]
    %v217 = vld [vmem:[%s2 + $0x18] sm:$0xff]
    %v218 = vld [vmem:[%s2 + $0x20] sm:$0xff]
    %v219 = vld [vmem:[%s2 + $0x28] sm:$0xff]
    %v220 = vld [vmem:[%s2 + $0x30] sm:$0xff]
    %v221 = vld [vmem:[%s2 + $0x38] sm:$0xff]
    %s222 = scalar_lea.vmem %s3, 64
    %v223 = vld [vmem:[%s222] sm:$0xff]
    %v224 = vld [vmem:[%s222 + $0x8] sm:$0xff]
    %v225 = vld [vmem:[%s222 + $0x10] sm:$0xff]
    %v226 = vld [vmem:[%s222 + $0x18] sm:$0xff]
    %v227 = vld [vmem:[%s222 + $0x20] sm:$0xff]
    %v228 = vld [vmem:[%s222 + $0x28] sm:$0xff]
    %v229 = vld [vmem:[%s222 + $0x30] sm:$0xff]
    %v230 = vld [vmem:[%s222 + $0x38] sm:$0xff]
    %232 = vset.pattern.permute.xlu0 0
    %233 = vperm.xlu0 %232, %v223
    %v234 = vpop.permute.xlu0 %233
    %237 = vset.pattern.permute.xlu0 0
    %238 = vperm.xlu0 %237, %v224
    %v239 = vpop.permute.xlu0 %238
    %242 = vset.pattern.permute.xlu0 0
    %243 = vperm.xlu0 %242, %v225
    %v244 = vpop.permute.xlu0 %243
    %247 = vset.pattern.permute.xlu0 0
    %248 = vperm.xlu0 %247, %v226
    %v249 = vpop.permute.xlu0 %248
    %252 = vset.pattern.permute.xlu0 0
    %253 = vperm.xlu0 %252, %v227
    %v254 = vpop.permute.xlu0 %253
    %257 = vset.pattern.permute.xlu0 0
    %258 = vperm.xlu0 %257, %v228
    %v259 = vpop.permute.xlu0 %258
    %262 = vset.pattern.permute.xlu0 0
    %263 = vperm.xlu0 %262, %v229
    %v264 = vpop.permute.xlu0 %263
    %267 = vset.pattern.permute.xlu0 0
    %268 = vperm.xlu0 %267, %v230
    %v269 = vpop.permute.xlu0 %268
    %vm271 = vcmask 523264
    %v273 = vsel %vm271, %v214, 0
    %v276 = vsel %vm271, %v215, 0
    %v279 = vsel %vm271, %v216, 0
    %v282 = vsel %vm271, %v217, 0
    %v285 = vsel %vm271, %v218, 0
    %v288 = vsel %vm271, %v219, 0
    %v291 = vsel %vm271, %v220, 0
    %v294 = vsel %vm271, %v221, 0
    %296 = vmatprep.subr.mxu0 0.0
    %297 = vmatpush1.msra.mxu0 %v206
    %298 = vmatprep.subr.mxu0 0.0
    %299 = vmatpush1.msra.mxu0 %v207
    %300 = vmatprep.subr.mxu0 0.0
    %301 = vmatpush1.msra.mxu0 %v208
    %302 = vmatprep.subr.mxu0 0.0
    %303 = vmatpush1.msra.mxu0 %v209
    %304 = vmatprep.subr.mxu0 0.0
    %305 = vmatpush1.msra.mxu0 %v210
    %306 = vmatprep.subr.mxu0 0.0
    %307 = vmatpush1.msra.mxu0 %v211
    %308 = vmatprep.subr.mxu0 0.0
    %309 = vmatpush1.msra.mxu0 %v212
    %310 = vmatprep.subr.mxu0 0.0
    %311 = vmatpush1.msra.mxu0 %v213
    %312 = vmatprep.subr.mxu0 0.0
    %313 = vmatpush1.msra.mxu0 0.0
    %314 = vmatprep.subr.mxu0 0.0
    %315 = vmatpush1.msra.mxu0 0.0
    %316 = vmatprep.subr.mxu0 0.0
    %317 = vmatpush1.msra.mxu0 0.0
    %318 = vmatprep.subr.mxu0 0.0
    %319 = vmatpush1.msra.mxu0 0.0
    %320 = vmatprep.subr.mxu0 0.0
    %321 = vmatpush1.msra.mxu0 0.0
    %322 = vmatprep.subr.mxu0 0.0
    %323 = vmatpush1.msra.mxu0 0.0
    %324 = vmatprep.subr.mxu0 0.0
    %325 = vmatpush1.msra.mxu0 0.0
    %326 = vmatprep.subr.mxu0 0.0
    %327 = vmatpush1.msra.mxu0 0.0
    %328 = vmatprep.subr.mxu0 0.0
    %329 = vmatpush1.msra.mxu0 0.0
    %330 = vmatprep.subr.mxu0 0.0
    %331 = vmatpush1.msra.mxu0 0.0
    %332 = vmatprep.subr.mxu0 0.0
    %333 = vmatpush1.msra.mxu0 0.0
    %334 = vmatprep.subr.mxu0 0.0
    %335 = vmatpush1.msra.mxu0 0.0
    %336 = vmatprep.subr.mxu0 0.0
    %337 = vmatpush1.msra.mxu0 0.0
    %338 = vmatprep.subr.mxu0 0.0
    %339 = vmatpush1.msra.mxu0 0.0
    %340 = vmatprep.subr.mxu0 0.0
    %341 = vmatpush1.msra.mxu0 0.0
    %342 = vmatprep.subr.mxu0 0.0
    %343 = vmatpush1.msra.mxu0 0.0
    %344 = vmatprep.subr.mxu0 0.0
    %345 = vmatpush1.msra.mxu0 0.0
    %346 = vmatprep.subr.mxu0 0.0
    %347 = vmatpush1.msra.mxu0 0.0
    %348 = vmatprep.subr.mxu0 0.0
    %349 = vmatpush1.msra.mxu0 0.0
    %350 = vmatprep.subr.mxu0 0.0
    %351 = vmatpush1.msra.mxu0 0.0
    %352 = vmatprep.subr.mxu0 0.0
    %353 = vmatpush1.msra.mxu0 0.0
    %354 = vmatprep.subr.mxu0 0.0
    %355 = vmatpush1.msra.mxu0 0.0
    %356 = vmatprep.subr.mxu0 0.0
    %357 = vmatpush1.msra.mxu0 0.0
    %358 = vmatprep.subr.mxu0 0.0
    %359 = vmatpush1.msra.mxu0 0.0
    %360 = vmatprep.mubr.f32.mxu0 0.0
    %361 = vmatmul.mubr.f32.gmra.mrb[0].mxu0 %v273
    %v362 = vpop.f32.mrb[0].mxu0
    %v363 = vadd.f32 %v234, %v362
    %v364 = vpop.f32.mrb[0].mxu0
    %365 = vmatprep.mubr.f32.mxu0 0.0
    %366 = vmatmul.mubr.f32.gmra.mrb[0].mxu0 %v276
    %v367 = vpop.f32.mrb[0].mxu0
    %v368 = vadd.f32 %v239, %v367
    %v369 = vpop.f32.mrb[0].mxu0
    %370 = vmatprep.mubr.f32.mxu0 0.0
    %371 = vmatmul.mubr.f32.gmra.mrb[0].mxu0 %v279
    %v372 = vpop.f32.mrb[0].mxu0
    %v373 = vadd.f32 %v244, %v372
    %v374 = vpop.f32.mrb[0].mxu0
    %375 = vmatprep.mubr.f32.mxu0 0.0
    %376 = vmatmul.mubr.f32.gmra.mrb[0].mxu0 %v282
    %v377 = vpop.f32.mrb[0].mxu0
    %v378 = vadd.f32 %v249, %v377
    %v379 = vpop.f32.mrb[0].mxu0
    %380 = vmatprep.mubr.f32.mxu0 0.0
    %381 = vmatmul.mubr.f32.gmra.mrb[0].mxu0 %v285
    %v382 = vpop.f32.mrb[0].mxu0
    %v383 = vadd.f32 %v254, %v382
    %v384 = vpop.f32.mrb[0].mxu0
    %385 = vmatprep.mubr.f32.mxu0 0.0
    %386 = vmatmul.mubr.f32.gmra.mrb[0].mxu0 %v288
    %v387 = vpop.f32.mrb[0].mxu0
    %v388 = vadd.f32 %v259, %v387
    %v389 = vpop.f32.mrb[0].mxu0
    %390 = vmatprep.mubr.f32.mxu0 0.0
    %391 = vmatmul.mubr.f32.gmra.mrb[0].mxu0 %v291
    %v392 = vpop.f32.mrb[0].mxu0
    %v393 = vadd.f32 %v264, %v392
    %v394 = vpop.f32.mrb[0].mxu0
    %395 = vmatprep.mubr.f32.mxu0 0.0
    %396 = vmatmul.mubr.f32.gmra.mrb[0].mxu0 %v294
    %v397 = vpop.f32.mrb[0].mxu0
    %v398 = vadd.f32 %v269, %v397
    %v399 = vpop.f32.mrb[0].mxu0
    %400 = vdwg.mxu0
    %v401 = vmax.f32 %v363, 0.0
    %v402 = vmax.f32 %v368, 0.0
    %v403 = vmax.f32 %v373, 0.0
    %v404 = vmax.f32 %v378, 0.0
    %v405 = vmax.f32 %v383, 0.0
    %v406 = vmax.f32 %v388, 0.0
    %v407 = vmax.f32 %v393, 0.0
    %v408 = vmax.f32 %v398, 0.0
    %s409 = scalar_lea.vmem %s2, 64
    %v410 = vld [vmem:[%s409] sm:$0xff]
    %v411 = vld [vmem:[%s409 + $0x8] sm:$0xff]
    %v412 = vld [vmem:[%s409 + $0x10] sm:$0xff]
    %v413 = vld [vmem:[%s409 + $0x18] sm:$0xff]
    %v414 = vld [vmem:[%s409 + $0x20] sm:$0xff]
    %v415 = vld [vmem:[%s409 + $0x28] sm:$0xff]
    %v416 = vld [vmem:[%s409 + $0x30] sm:$0xff]
    %v417 = vld [vmem:[%s409 + $0x38] sm:$0xff]
    %s418 = scalar_lea.vmem %s3, 128
    %v419 = vld [vmem:[%s418] sm:$0xff]
    %v420 = vld [vmem:[%s418 + $0x8] sm:$0xff]
    %v421 = vld [vmem:[%s418 + $0x10] sm:$0xff]
    %v422 = vld [vmem:[%s418 + $0x18] sm:$0xff]
    %v423 = vld [vmem:[%s418 + $0x20] sm:$0xff]
    %v424 = vld [vmem:[%s418 + $0x28] sm:$0xff]
    %v425 = vld [vmem:[%s418 + $0x30] sm:$0xff]
    %v426 = vld [vmem:[%s418 + $0x38] sm:$0xff]
    %428 = vset.pattern.permute.xlu0 0
    %429 = vperm.xlu0 %428, %v419
    %v430 = vpop.permute.xlu0 %429
    %433 = vset.pattern.permute.xlu0 0
    %434 = vperm.xlu0 %433, %v420
    %v435 = vpop.permute.xlu0 %434
    %438 = vset.pattern.permute.xlu0 0
    %439 = vperm.xlu0 %438, %v421
    %v440 = vpop.permute.xlu0 %439
    %443 = vset.pattern.permute.xlu0 0
    %444 = vperm.xlu0 %443, %v422
    %v445 = vpop.permute.xlu0 %444
    %448 = vset.pattern.permute.xlu0 0
    %449 = vperm.xlu0 %448, %v423
    %v450 = vpop.permute.xlu0 %449
    %453 = vset.pattern.permute.xlu0 0
    %454 = vperm.xlu0 %453, %v424
    %v455 = vpop.permute.xlu0 %454
    %458 = vset.pattern.permute.xlu0 0
    %459 = vperm.xlu0 %458, %v425
    %v460 = vpop.permute.xlu0 %459
    %463 = vset.pattern.permute.xlu0 0
    %464 = vperm.xlu0 %463, %v426
    %v465 = vpop.permute.xlu0 %464
    %v468 = vsel %vm271, %v410, 0
    %v471 = vsel %vm271, %v411, 0
    %v474 = vsel %vm271, %v412, 0
    %v477 = vsel %vm271, %v413, 0
    %v480 = vsel %vm271, %v414, 0
    %v483 = vsel %vm271, %v415, 0
    %v486 = vsel %vm271, %v416, 0
    %v489 = vsel %vm271, %v417, 0
    %491 = vmatprep.subr.mxu0 0.0
    %492 = vmatpush1.msra.mxu0 %v401
    %493 = vmatprep.subr.mxu0 0.0
    %494 = vmatpush1.msra.mxu0 %v402
    %495 = vmatprep.subr.mxu0 0.0
    %496 = vmatpush1.msra.mxu0 %v403
    %497 = vmatprep.subr.mxu0 0.0
    %498 = vmatpush1.msra.mxu0 %v404
    %499 = vmatprep.subr.mxu0 0.0
    %500 = vmatpush1.msra.mxu0 %v405
    %501 = vmatprep.subr.mxu0 0.0
    %502 = vmatpush1.msra.mxu0 %v406
    %503 = vmatprep.subr.mxu0 0.0
    %504 = vmatpush1.msra.mxu0 %v407
    %505 = vmatprep.subr.mxu0 0.0
    %506 = vmatpush1.msra.mxu0 %v408
    %507 = vmatprep.subr.mxu0 0.0
    %508 = vmatpush1.msra.mxu0 0.0
    %509 = vmatprep.subr.mxu0 0.0
    %510 = vmatpush1.msra.mxu0 0.0
    %511 = vmatprep.subr.mxu0 0.0
    %512 = vmatpush1.msra.mxu0 0.0
    %513 = vmatprep.subr.mxu0 0.0
    %514 = vmatpush1.msra.mxu0 0.0
    %515 = vmatprep.subr.mxu0 0.0
    %516 = vmatpush1.msra.mxu0 0.0
    %517 = vmatprep.subr.mxu0 0.0
    %518 = vmatpush1.msra.mxu0 0.0
    %519 = vmatprep.subr.mxu0 0.0
    %520 = vmatpush1.msra.mxu0 0.0
    %521 = vmatprep.subr.mxu0 0.0
    %522 = vmatpush1.msra.mxu0 0.0
    %523 = vmatprep.subr.mxu0 0.0
    %524 = vmatpush1.msra.mxu0 0.0
    %525 = vmatprep.subr.mxu0 0.0
    %526 = vmatpush1.msra.mxu0 0.0
    %527 = vmatprep.subr.mxu0 0.0
    %528 = vmatpush1.msra.mxu0 0.0
    %529 = vmatprep.subr.mxu0 0.0
    %530 = vmatpush1.msra.mxu0 0.0
    %531 = vmatprep.subr.mxu0 0.0
    %532 = vmatpush1.msra.mxu0 0.0
    %533 = vmatprep.subr.mxu0 0.0
    %534 = vmatpush1.msra.mxu0 0.0
    %535 = vmatprep.subr.mxu0 0.0
    %536 = vmatpush1.msra.mxu0 0.0
    %537 = vmatprep.subr.mxu0 0.0
    %538 = vmatpush1.msra.mxu0 0.0
    %539 = vmatprep.subr.mxu0 0.0
    %540 = vmatpush1.msra.mxu0 0.0
    %541 = vmatprep.subr.mxu0 0.0
    %542 = vmatpush1.msra.mxu0 0.0
    %543 = vmatprep.subr.mxu0 0.0
    %544 = vmatpush1.msra.mxu0 0.0
    %545 = vmatprep.subr.mxu0 0.0
    %546 = vmatpush1.msra.mxu0 0.0
    %547 = vmatprep.subr.mxu0 0.0
    %548 = vmatpush1.msra.mxu0 0.0
    %549 = vmatprep.subr.mxu0 0.0
    %550 = vmatpush1.msra.mxu0 0.0
    %551 = vmatprep.subr.mxu0 0.0
    %552 = vmatpush1.msra.mxu0 0.0
    %553 = vmatprep.subr.mxu0 0.0
    %554 = vmatpush1.msra.mxu0 0.0
    %555 = vmatprep.mubr.f32.mxu0 0.0
    %556 = vmatmul.mubr.f32.gmra.mrb[0].mxu0 %v468
    %v557 = vpop.f32.mrb[0].mxu0
    %v558 = vadd.f32 %v430, %v557
    %v559 = vpop.f32.mrb[0].mxu0
    %560 = vmatprep.mubr.f32.mxu0 0.0
    %561 = vmatmul.mubr.f32.gmra.mrb[0].mxu0 %v471
    %v562 = vpop.f32.mrb[0].mxu0
    %v563 = vadd.f32 %v435, %v562
    %v564 = vpop.f32.mrb[0].mxu0
    %565 = vmatprep.mubr.f32.mxu0 0.0
    %566 = vmatmul.mubr.f32.gmra.mrb[0].mxu0 %v474
    %v567 = vpop.f32.mrb[0].mxu0
    %v568 = vadd.f32 %v440, %v567
    %v569 = vpop.f32.mrb[0].mxu0
    %570 = vmatprep.mubr.f32.mxu0 0.0
    %571 = vmatmul.mubr.f32.gmra.mrb[0].mxu0 %v477
    %v572 = vpop.f32.mrb[0].mxu0
    %v573 = vadd.f32 %v445, %v572
    %v574 = vpop.f32.mrb[0].mxu0
    %575 = vmatprep.mubr.f32.mxu0 0.0
    %576 = vmatmul.mubr.f32.gmra.mrb[0].mxu0 %v480
    %v577 = vpop.f32.mrb[0].mxu0
    %v578 = vadd.f32 %v450, %v577
    %v579 = vpop.f32.mrb[0].mxu0
    %580 = vmatprep.mubr.f32.mxu0 0.0
    %581 = vmatmul.mubr.f32.gmra.mrb[0].mxu0 %v483
    %v582 = vpop.f32.mrb[0].mxu0
    %v583 = vadd.f32 %v455, %v582
    %v584 = vpop.f32.mrb[0].mxu0
    %585 = vmatprep.mubr.f32.mxu0 0.0
    %586 = vmatmul.mubr.f32.gmra.mrb[0].mxu0 %v486
    %v587 = vpop.f32.mrb[0].mxu0
    %v588 = vadd.f32 %v460, %v587
    %v589 = vpop.f32.mrb[0].mxu0
    %590 = vmatprep.mubr.f32.mxu0 0.0
    %591 = vmatmul.mubr.f32.gmra.mrb[0].mxu0 %v489
    %v592 = vpop.f32.mrb[0].mxu0
    %v593 = vadd.f32 %v465, %v592
    %v594 = vpop.f32.mrb[0].mxu0
    %595 = vdwg.mxu0
    %v596 = vmax.f32 %v558, 0.0
    %v597 = vmax.f32 %v563, 0.0
    %v598 = vmax.f32 %v568, 0.0
    %v599 = vmax.f32 %v573, 0.0
    %v600 = vmax.f32 %v578, 0.0
    %v601 = vmax.f32 %v583, 0.0
    %v602 = vmax.f32 %v588, 0.0
    %v603 = vmax.f32 %v593, 0.0
    %s604 = scalar_lea.vmem %s2, 128
    %v605 = vld [vmem:[%s604] sm:$0xff]
    %v606 = vld [vmem:[%s604 + $0x8] sm:$0xff]
    %v607 = vld [vmem:[%s604 + $0x10] sm:$0xff]
    %v608 = vld [vmem:[%s604 + $0x18] sm:$0xff]
    %v609 = vld [vmem:[%s604 + $0x20] sm:$0xff]
    %v610 = vld [vmem:[%s604 + $0x28] sm:$0xff]
    %v611 = vld [vmem:[%s604 + $0x30] sm:$0xff]
    %v612 = vld [vmem:[%s604 + $0x38] sm:$0xff]
    %s613 = scalar_lea.vmem %s3, 192
    %v614 = vld [vmem:[%s613] sm:$0xff]
    %v615 = vld [vmem:[%s613 + $0x8] sm:$0xff]
    %v616 = vld [vmem:[%s613 + $0x10] sm:$0xff]
    %v617 = vld [vmem:[%s613 + $0x18] sm:$0xff]
    %v618 = vld [vmem:[%s613 + $0x20] sm:$0xff]
    %v619 = vld [vmem:[%s613 + $0x28] sm:$0xff]
    %v620 = vld [vmem:[%s613 + $0x30] sm:$0xff]
    %v621 = vld [vmem:[%s613 + $0x38] sm:$0xff]
    %623 = vset.pattern.permute.xlu0 0
    %624 = vperm.xlu0 %623, %v614
    %v625 = vpop.permute.xlu0 %624
    %628 = vset.pattern.permute.xlu0 0
    %629 = vperm.xlu0 %628, %v615
    %v630 = vpop.permute.xlu0 %629
    %633 = vset.pattern.permute.xlu0 0
    %634 = vperm.xlu0 %633, %v616
    %v635 = vpop.permute.xlu0 %634
    %638 = vset.pattern.permute.xlu0 0
    %639 = vperm.xlu0 %638, %v617
    %v640 = vpop.permute.xlu0 %639
    %643 = vset.pattern.permute.xlu0 0
    %644 = vperm.xlu0 %643, %v618
    %v645 = vpop.permute.xlu0 %644
    %648 = vset.pattern.permute.xlu0 0
    %649 = vperm.xlu0 %648, %v619
    %v650 = vpop.permute.xlu0 %649
    %653 = vset.pattern.permute.xlu0 0
    %654 = vperm.xlu0 %653, %v620
    %v655 = vpop.permute.xlu0 %654
    %658 = vset.pattern.permute.xlu0 0
    %659 = vperm.xlu0 %658, %v621
    %v660 = vpop.permute.xlu0 %659
    %v663 = vsel %vm271, %v605, 0
    %v666 = vsel %vm271, %v606, 0
    %v669 = vsel %vm271, %v607, 0
    %v672 = vsel %vm271, %v608, 0
    %v675 = vsel %vm271, %v609, 0
    %v678 = vsel %vm271, %v610, 0
    %v681 = vsel %vm271, %v611, 0
    %v684 = vsel %vm271, %v612, 0
    %686 = vmatprep.subr.mxu0 0.0
    %687 = vmatpush1.msra.mxu0 %v596
    %688 = vmatprep.subr.mxu0 0.0
    %689 = vmatpush1.msra.mxu0 %v597
    %690 = vmatprep.subr.mxu0 0.0
    %691 = vmatpush1.msra.mxu0 %v598
    %692 = vmatprep.subr.mxu0 0.0
    %693 = vmatpush1.msra.mxu0 %v599
    %694 = vmatprep.subr.mxu0 0.0
    %695 = vmatpush1.msra.mxu0 %v600
    %696 = vmatprep.subr.mxu0 0.0
    %697 = vmatpush1.msra.mxu0 %v601
    %698 = vmatprep.subr.mxu0 0.0
    %699 = vmatpush1.msra.mxu0 %v602
    %700 = vmatprep.subr.mxu0 0.0
    %701 = vmatpush1.msra.mxu0 %v603
    %702 = vmatprep.subr.mxu0 0.0
    %703 = vmatpush1.msra.mxu0 0.0
    %704 = vmatprep.subr.mxu0 0.0
    %705 = vmatpush1.msra.mxu0 0.0
    %706 = vmatprep.subr.mxu0 0.0
    %707 = vmatpush1.msra.mxu0 0.0
    %708 = vmatprep.subr.mxu0 0.0
    %709 = vmatpush1.msra.mxu0 0.0
    %710 = vmatprep.subr.mxu0 0.0
    %711 = vmatpush1.msra.mxu0 0.0
    %712 = vmatprep.subr.mxu0 0.0
    %713 = vmatpush1.msra.mxu0 0.0
    %714 = vmatprep.subr.mxu0 0.0
    %715 = vmatpush1.msra.mxu0 0.0
    %716 = vmatprep.subr.mxu0 0.0
    %717 = vmatpush1.msra.mxu0 0.0
    %718 = vmatprep.subr.mxu0 0.0
    %719 = vmatpush1.msra.mxu0 0.0
    %720 = vmatprep.subr.mxu0 0.0
    %721 = vmatpush1.msra.mxu0 0.0
    %722 = vmatprep.subr.mxu0 0.0
    %723 = vmatpush1.msra.mxu0 0.0
    %724 = vmatprep.subr.mxu0 0.0
    %725 = vmatpush1.msra.mxu0 0.0
    %726 = vmatprep.subr.mxu0 0.0
    %727 = vmatpush1.msra.mxu0 0.0
    %728 = vmatprep.subr.mxu0 0.0
    %729 = vmatpush1.msra.mxu0 0.0
    %730 = vmatprep.subr.mxu0 0.0
    %731 = vmatpush1.msra.mxu0 0.0
    %732 = vmatprep.subr.mxu0 0.0
    %733 = vmatpush1.msra.mxu0 0.0
    %734 = vmatprep.subr.mxu0 0.0
    %735 = vmatpush1.msra.mxu0 0.0
    %736 = vmatprep.subr.mxu0 0.0
    %737 = vmatpush1.msra.mxu0 0.0
    %738 = vmatprep.subr.mxu0 0.0
    %739 = vmatpush1.msra.mxu0 0.0
    %740 = vmatprep.subr.mxu0 0.0
    %741 = vmatpush1.msra.mxu0 0.0
    %742 = vmatprep.subr.mxu0 0.0
    %743 = vmatpush1.msra.mxu0 0.0
    %744 = vmatprep.subr.mxu0 0.0
    %745 = vmatpush1.msra.mxu0 0.0
    %746 = vmatprep.subr.mxu0 0.0
    %747 = vmatpush1.msra.mxu0 0.0
    %748 = vmatprep.subr.mxu0 0.0
    %749 = vmatpush1.msra.mxu0 0.0
    %750 = vmatprep.mubr.f32.mxu0 0.0
    %751 = vmatmul.mubr.f32.gmra.mrb[0].mxu0 %v663
    %v752 = vpop.f32.mrb[0].mxu0
    %v753 = vadd.f32 %v625, %v752
    %v754 = vpop.f32.mrb[0].mxu0
    %755 = vmatprep.mubr.f32.mxu0 0.0
    %756 = vmatmul.mubr.f32.gmra.mrb[0].mxu0 %v666
    %v757 = vpop.f32.mrb[0].mxu0
    %v758 = vadd.f32 %v630, %v757
    %v759 = vpop.f32.mrb[0].mxu0
    %760 = vmatprep.mubr.f32.mxu0 0.0
    %761 = vmatmul.mubr.f32.gmra.mrb[0].mxu0 %v669
    %v762 = vpop.f32.mrb[0].mxu0
    %v763 = vadd.f32 %v635, %v762
    %v764 = vpop.f32.mrb[0].mxu0
    %765 = vmatprep.mubr.f32.mxu0 0.0
    %766 = vmatmul.mubr.f32.gmra.mrb[0].mxu0 %v672
    %v767 = vpop.f32.mrb[0].mxu0
    %v768 = vadd.f32 %v640, %v767
    %v769 = vpop.f32.mrb[0].mxu0
    %770 = vmatprep.mubr.f32.mxu0 0.0
    %771 = vmatmul.mubr.f32.gmra.mrb[0].mxu0 %v675
    %v772 = vpop.f32.mrb[0].mxu0
    %v773 = vadd.f32 %v645, %v772
    %v774 = vpop.f32.mrb[0].mxu0
    %775 = vmatprep.mubr.f32.mxu0 0.0
    %776 = vmatmul.mubr.f32.gmra.mrb[0].mxu0 %v678
    %v777 = vpop.f32.mrb[0].mxu0
    %v778 = vadd.f32 %v650, %v777
    %v779 = vpop.f32.mrb[0].mxu0
    %780 = vmatprep.mubr.f32.mxu0 0.0
    %781 = vmatmul.mubr.f32.gmra.mrb[0].mxu0 %v681
    %v782 = vpop.f32.mrb[0].mxu0
    %v783 = vadd.f32 %v655, %v782
    %v784 = vpop.f32.mrb[0].mxu0
    %785 = vmatprep.mubr.f32.mxu0 0.0
    %786 = vmatmul.mubr.f32.gmra.mrb[0].mxu0 %v684
    %v787 = vpop.f32.mrb[0].mxu0
    %v788 = vadd.f32 %v660, %v787
    %v789 = vpop.f32.mrb[0].mxu0
    %790 = vdwg.mxu0
    %v791 = vmax.f32 %v753, 0.0
    %v792 = vmax.f32 %v758, 0.0
    %v793 = vmax.f32 %v763, 0.0
    %v794 = vmax.f32 %v768, 0.0
    %v795 = vmax.f32 %v773, 0.0
    %v796 = vmax.f32 %v778, 0.0
    %v797 = vmax.f32 %v783, 0.0
    %v798 = vmax.f32 %v788, 0.0
    %s799 = scalar_lea.vmem %s2, 192
    %v800 = vld [vmem:[%s799] sm:$0xff]
    %v801 = vld [vmem:[%s799 + $0x8] sm:$0xff]
    %v802 = vld [vmem:[%s799 + $0x10] sm:$0xff]
    %v803 = vld [vmem:[%s799 + $0x18] sm:$0xff]
    %v804 = vld [vmem:[%s799 + $0x20] sm:$0xff]
    %v805 = vld [vmem:[%s799 + $0x28] sm:$0xff]
    %v806 = vld [vmem:[%s799 + $0x30] sm:$0xff]
    %v807 = vld [vmem:[%s799 + $0x38] sm:$0xff]
    %s808 = scalar_lea.vmem %s3, 256
    %v809 = vld [vmem:[%s808] sm:$0xff]
    %v810 = vld [vmem:[%s808 + $0x8] sm:$0xff]
    %v811 = vld [vmem:[%s808 + $0x10] sm:$0xff]
    %v812 = vld [vmem:[%s808 + $0x18] sm:$0xff]
    %v813 = vld [vmem:[%s808 + $0x20] sm:$0xff]
    %v814 = vld [vmem:[%s808 + $0x28] sm:$0xff]
    %v815 = vld [vmem:[%s808 + $0x30] sm:$0xff]
    %v816 = vld [vmem:[%s808 + $0x38] sm:$0xff]
    %818 = vset.pattern.permute.xlu0 0
    %819 = vperm.xlu0 %818, %v809
    %v820 = vpop.permute.xlu0 %819
    %823 = vset.pattern.permute.xlu0 0
    %824 = vperm.xlu0 %823, %v810
    %v825 = vpop.permute.xlu0 %824
    %828 = vset.pattern.permute.xlu0 0
    %829 = vperm.xlu0 %828, %v811
    %v830 = vpop.permute.xlu0 %829
    %833 = vset.pattern.permute.xlu0 0
    %834 = vperm.xlu0 %833, %v812
    %v835 = vpop.permute.xlu0 %834
    %838 = vset.pattern.permute.xlu0 0
    %839 = vperm.xlu0 %838, %v813
    %v840 = vpop.permute.xlu0 %839
    %843 = vset.pattern.permute.xlu0 0
    %844 = vperm.xlu0 %843, %v814
    %v845 = vpop.permute.xlu0 %844
    %848 = vset.pattern.permute.xlu0 0
    %849 = vperm.xlu0 %848, %v815
    %v850 = vpop.permute.xlu0 %849
    %853 = vset.pattern.permute.xlu0 0
    %854 = vperm.xlu0 %853, %v816
    %v855 = vpop.permute.xlu0 %854
    %v858 = vsel %vm271, %v800, 0
    %v861 = vsel %vm271, %v801, 0
    %v864 = vsel %vm271, %v802, 0
    %v867 = vsel %vm271, %v803, 0
    %v870 = vsel %vm271, %v804, 0
    %v873 = vsel %vm271, %v805, 0
    %v876 = vsel %vm271, %v806, 0
    %v879 = vsel %vm271, %v807, 0
    %881 = vmatprep.subr.mxu0 0.0
    %882 = vmatpush1.msra.mxu0 %v791
    %883 = vmatprep.subr.mxu0 0.0
    %884 = vmatpush1.msra.mxu0 %v792
    %885 = vmatprep.subr.mxu0 0.0
    %886 = vmatpush1.msra.mxu0 %v793
    %887 = vmatprep.subr.mxu0 0.0
    %888 = vmatpush1.msra.mxu0 %v794
    %889 = vmatprep.subr.mxu0 0.0
    %890 = vmatpush1.msra.mxu0 %v795
    %891 = vmatprep.subr.mxu0 0.0
    %892 = vmatpush1.msra.mxu0 %v796
    %893 = vmatprep.subr.mxu0 0.0
    %894 = vmatpush1.msra.mxu0 %v797
    %895 = vmatprep.subr.mxu0 0.0
    %896 = vmatpush1.msra.mxu0 %v798
    %897 = vmatprep.subr.mxu0 0.0
    %898 = vmatpush1.msra.mxu0 0.0
    %899 = vmatprep.subr.mxu0 0.0
    %900 = vmatpush1.msra.mxu0 0.0
    %901 = vmatprep.subr.mxu0 0.0
    %902 = vmatpush1.msra.mxu0 0.0
    %903 = vmatprep.subr.mxu0 0.0
    %904 = vmatpush1.msra.mxu0 0.0
    %905 = vmatprep.subr.mxu0 0.0
    %906 = vmatpush1.msra.mxu0 0.0
    %907 = vmatprep.subr.mxu0 0.0
    %908 = vmatpush1.msra.mxu0 0.0
    %909 = vmatprep.subr.mxu0 0.0
    %910 = vmatpush1.msra.mxu0 0.0
    %911 = vmatprep.subr.mxu0 0.0
    %912 = vmatpush1.msra.mxu0 0.0
    %913 = vmatprep.subr.mxu0 0.0
    %914 = vmatpush1.msra.mxu0 0.0
    %915 = vmatprep.subr.mxu0 0.0
    %916 = vmatpush1.msra.mxu0 0.0
    %917 = vmatprep.subr.mxu0 0.0
    %918 = vmatpush1.msra.mxu0 0.0
    %919 = vmatprep.subr.mxu0 0.0
    %920 = vmatpush1.msra.mxu0 0.0
    %921 = vmatprep.subr.mxu0 0.0
    %922 = vmatpush1.msra.mxu0 0.0
    %923 = vmatprep.subr.mxu0 0.0
    %924 = vmatpush1.msra.mxu0 0.0
    %925 = vmatprep.subr.mxu0 0.0
    %926 = vmatpush1.msra.mxu0 0.0
    %927 = vmatprep.subr.mxu0 0.0
    %928 = vmatpush1.msra.mxu0 0.0
    %929 = vmatprep.subr.mxu0 0.0
    %930 = vmatpush1.msra.mxu0 0.0
    %931 = vmatprep.subr.mxu0 0.0
    %932 = vmatpush1.msra.mxu0 0.0
    %933 = vmatprep.subr.mxu0 0.0
    %934 = vmatpush1.msra.mxu0 0.0
    %935 = vmatprep.subr.mxu0 0.0
    %936 = vmatpush1.msra.mxu0 0.0
    %937 = vmatprep.subr.mxu0 0.0
    %938 = vmatpush1.msra.mxu0 0.0
    %939 = vmatprep.subr.mxu0 0.0
    %940 = vmatpush1.msra.mxu0 0.0
    %941 = vmatprep.subr.mxu0 0.0
    %942 = vmatpush1.msra.mxu0 0.0
    %943 = vmatprep.subr.mxu0 0.0
    %944 = vmatpush1.msra.mxu0 0.0
    %945 = vmatprep.mubr.f32.mxu0 0.0
    %946 = vmatmul.mubr.f32.gmra.mrb[0].mxu0 %v858
    %v947 = vpop.f32.mrb[0].mxu0
    %v948 = vadd.f32 %v820, %v947
    %v949 = vpop.f32.mrb[0].mxu0
    %950 = vmatprep.mubr.f32.mxu0 0.0
    %951 = vmatmul.mubr.f32.gmra.mrb[0].mxu0 %v861
    %v952 = vpop.f32.mrb[0].mxu0
    %v953 = vadd.f32 %v825, %v952
    %v954 = vpop.f32.mrb[0].mxu0
    %955 = vmatprep.mubr.f32.mxu0 0.0
    %956 = vmatmul.mubr.f32.gmra.mrb[0].mxu0 %v864
    %v957 = vpop.f32.mrb[0].mxu0
    %v958 = vadd.f32 %v830, %v957
    %v959 = vpop.f32.mrb[0].mxu0
    %960 = vmatprep.mubr.f32.mxu0 0.0
    %961 = vmatmul.mubr.f32.gmra.mrb[0].mxu0 %v867
    %v962 = vpop.f32.mrb[0].mxu0
    %v963 = vadd.f32 %v835, %v962
    %v964 = vpop.f32.mrb[0].mxu0
    %965 = vmatprep.mubr.f32.mxu0 0.0
    %966 = vmatmul.mubr.f32.gmra.mrb[0].mxu0 %v870
    %v967 = vpop.f32.mrb[0].mxu0
    %v968 = vadd.f32 %v840, %v967
    %v969 = vpop.f32.mrb[0].mxu0
    %970 = vmatprep.mubr.f32.mxu0 0.0
    %971 = vmatmul.mubr.f32.gmra.mrb[0].mxu0 %v873
    %v972 = vpop.f32.mrb[0].mxu0
    %v973 = vadd.f32 %v845, %v972
    %v974 = vpop.f32.mrb[0].mxu0
    %975 = vmatprep.mubr.f32.mxu0 0.0
    %976 = vmatmul.mubr.f32.gmra.mrb[0].mxu0 %v876
    %v977 = vpop.f32.mrb[0].mxu0
    %v978 = vadd.f32 %v850, %v977
    %v979 = vpop.f32.mrb[0].mxu0
    %980 = vmatprep.mubr.f32.mxu0 0.0
    %981 = vmatmul.mubr.f32.gmra.mrb[0].mxu0 %v879
    %v982 = vpop.f32.mrb[0].mxu0
    %v983 = vadd.f32 %v855, %v982
    %v984 = vpop.f32.mrb[0].mxu0
    %985 = vdwg.mxu0
    %v986 = vmax.f32 %v948, 0.0
    %v987 = vmax.f32 %v953, 0.0
    %v988 = vmax.f32 %v958, 0.0
    %v989 = vmax.f32 %v963, 0.0
    %v990 = vmax.f32 %v968, 0.0
    %v991 = vmax.f32 %v973, 0.0
    %v992 = vmax.f32 %v978, 0.0
    %v993 = vmax.f32 %v983, 0.0
    %s994 = scalar_lea.vmem %s2, 256
    %v995 = vld [vmem:[%s994] sm:$0xff]
    %v996 = vld [vmem:[%s994 + $0x8] sm:$0xff]
    %v997 = vld [vmem:[%s994 + $0x10] sm:$0xff]
    %v998 = vld [vmem:[%s994 + $0x18] sm:$0xff]
    %v999 = vld [vmem:[%s994 + $0x20] sm:$0xff]
    %v1000 = vld [vmem:[%s994 + $0x28] sm:$0xff]
    %v1001 = vld [vmem:[%s994 + $0x30] sm:$0xff]
    %v1002 = vld [vmem:[%s994 + $0x38] sm:$0xff]
    %s1003 = scalar_lea.vmem %s3, 320
    %v1004 = vld [vmem:[%s1003] sm:$0xff]
    %v1005 = vld [vmem:[%s1003 + $0x8] sm:$0xff]
    %v1006 = vld [vmem:[%s1003 + $0x10] sm:$0xff]
    %v1007 = vld [vmem:[%s1003 + $0x18] sm:$0xff]
    %v1008 = vld [vmem:[%s1003 + $0x20] sm:$0xff]
    %v1009 = vld [vmem:[%s1003 + $0x28] sm:$0xff]
    %v1010 = vld [vmem:[%s1003 + $0x30] sm:$0xff]
    %v1011 = vld [vmem:[%s1003 + $0x38] sm:$0xff]
    %1013 = vset.pattern.permute.xlu0 0
    %1014 = vperm.xlu0 %1013, %v1004
    %v1015 = vpop.permute.xlu0 %1014
    %1018 = vset.pattern.permute.xlu0 0
    %1019 = vperm.xlu0 %1018, %v1005
    %v1020 = vpop.permute.xlu0 %1019
    %1022 = vset.pattern.permute.xlu0 0
    %1023 = vperm.xlu0 %1022, %v1006
    %v1024 = vpop.permute.xlu0 %1023
    %1026 = vset.pattern.permute.xlu0 0
    %1027 = vperm.xlu0 %1026, %v1007
    %v1028 = vpop.permute.xlu0 %1027
    %1030 = vset.pattern.permute.xlu0 0
    %1031 = vperm.xlu0 %1030, %v1008
    %v1032 = vpop.permute.xlu0 %1031
    %1034 = vset.pattern.permute.xlu0 0
    %1035 = vperm.xlu0 %1034, %v1009
    %v1036 = vpop.permute.xlu0 %1035
    %1038 = vset.pattern.permute.xlu0 0
    %1039 = vperm.xlu0 %1038, %v1010
    %v1040 = vpop.permute.xlu0 %1039
    %1042 = vset.pattern.permute.xlu0 0
    %1043 = vperm.xlu0 %1042, %v1011
    %v1044 = vpop.permute.xlu0 %1043
    %v1046 = vsel %vm271, %v995, 0
    %v1049 = vsel %vm271, %v996, 0
    %v1052 = vsel %vm271, %v997, 0
    %v1055 = vsel %vm271, %v998, 0
    %v1058 = vsel %vm271, %v999, 0
    %v1061 = vsel %vm271, %v1000, 0
    %v1064 = vsel %vm271, %v1001, 0
    %v1067 = vsel %vm271, %v1002, 0
    %1069 = vmatprep.subr.mxu0 0.0
    %1070 = vmatpush1.msra.mxu0 %v986
    %1071 = vmatprep.subr.mxu0 0.0
    %1072 = vmatpush1.msra.mxu0 %v987
    %1073 = vmatprep.subr.mxu0 0.0
    %1074 = vmatpush1.msra.mxu0 %v988
    %1075 = vmatprep.subr.mxu0 0.0
    %1076 = vmatpush1.msra.mxu0 %v989
    %1077 = vmatprep.subr.mxu0 0.0
    %1078 = vmatpush1.msra.mxu0 %v990
    %1079 = vmatprep.subr.mxu0 0.0
    %1080 = vmatpush1.msra.mxu0 %v991
    %1081 = vmatprep.subr.mxu0 0.0
    %1082 = vmatpush1.msra.mxu0 %v992
    %1083 = vmatprep.subr.mxu0 0.0
    %1084 = vmatpush1.msra.mxu0 %v993
    %1085 = vmatprep.subr.mxu0 0.0
    %1086 = vmatpush1.msra.mxu0 0.0
    %1087 = vmatprep.subr.mxu0 0.0
    %1088 = vmatpush1.msra.mxu0 0.0
    %1089 = vmatprep.subr.mxu0 0.0
    %1090 = vmatpush1.msra.mxu0 0.0
    %1091 = vmatprep.subr.mxu0 0.0
    %1092 = vmatpush1.msra.mxu0 0.0
    %1093 = vmatprep.subr.mxu0 0.0
    %1094 = vmatpush1.msra.mxu0 0.0
    %1095 = vmatprep.subr.mxu0 0.0
    %1096 = vmatpush1.msra.mxu0 0.0
    %1097 = vmatprep.subr.mxu0 0.0
    %1098 = vmatpush1.msra.mxu0 0.0
    %1099 = vmatprep.subr.mxu0 0.0
    %1100 = vmatpush1.msra.mxu0 0.0
    %1101 = vmatprep.subr.mxu0 0.0
    %1102 = vmatpush1.msra.mxu0 0.0
    %1103 = vmatprep.subr.mxu0 0.0
    %1104 = vmatpush1.msra.mxu0 0.0
    %1105 = vmatprep.subr.mxu0 0.0
    %1106 = vmatpush1.msra.mxu0 0.0
    %1107 = vmatprep.subr.mxu0 0.0
    %1108 = vmatpush1.msra.mxu0 0.0
    %1109 = vmatprep.subr.mxu0 0.0
    %1110 = vmatpush1.msra.mxu0 0.0
    %1111 = vmatprep.subr.mxu0 0.0
    %1112 = vmatpush1.msra.mxu0 0.0
    %1113 = vmatprep.subr.mxu0 0.0
    %1114 = vmatpush1.msra.mxu0 0.0
    %1115 = vmatprep.subr.mxu0 0.0
    %1116 = vmatpush1.msra.mxu0 0.0
    %1117 = vmatprep.subr.mxu0 0.0
    %1118 = vmatpush1.msra.mxu0 0.0
    %1119 = vmatprep.subr.mxu0 0.0
    %1120 = vmatpush1.msra.mxu0 0.0
    %1121 = vmatprep.subr.mxu0 0.0
    %1122 = vmatpush1.msra.mxu0 0.0
    %1123 = vmatprep.subr.mxu0 0.0
    %1124 = vmatpush1.msra.mxu0 0.0
    %1125 = vmatprep.subr.mxu0 0.0
    %1126 = vmatpush1.msra.mxu0 0.0
    %1127 = vmatprep.subr.mxu0 0.0
    %1128 = vmatpush1.msra.mxu0 0.0
    %1129 = vmatprep.subr.mxu0 0.0
    %1130 = vmatpush1.msra.mxu0 0.0
    %1131 = vmatprep.subr.mxu0 0.0
    %1132 = vmatpush1.msra.mxu0 0.0
    %1133 = vmatprep.mubr.f32.mxu0 0.0
    %1134 = vmatmul.mubr.f32.gmra.mrb[0].mxu0 %v1046
    %v1135 = vpop.f32.mrb[0].mxu0
    %v1136 = vadd.f32 %v1015, %v1135
    %v1137 = vpop.f32.mrb[0].mxu0
    %1138 = vmatprep.mubr.f32.mxu0 0.0
    %1139 = vmatmul.mubr.f32.gmra.mrb[0].mxu0 %v1049
    %v1140 = vpop.f32.mrb[0].mxu0
    %v1141 = vpop.f32.mrb[0].mxu0
    %1142 = vmatprep.mubr.f32.mxu0 0.0
    %1143 = vmatmul.mubr.f32.gmra.mrb[0].mxu0 %v1052
    %v1144 = vpop.f32.mrb[0].mxu0
    %v1145 = vpop.f32.mrb[0].mxu0
    %1146 = vmatprep.mubr.f32.mxu0 0.0
    %1147 = vmatmul.mubr.f32.gmra.mrb[0].mxu0 %v1055
    %v1148 = vpop.f32.mrb[0].mxu0
    %v1149 = vpop.f32.mrb[0].mxu0
    %1150 = vmatprep.mubr.f32.mxu0 0.0
    %1151 = vmatmul.mubr.f32.gmra.mrb[0].mxu0 %v1058
    %v1152 = vpop.f32.mrb[0].mxu0
    %v1153 = vpop.f32.mrb[0].mxu0
    %1154 = vmatprep.mubr.f32.mxu0 0.0
    %1155 = vmatmul.mubr.f32.gmra.mrb[0].mxu0 %v1061
    %v1156 = vpop.f32.mrb[0].mxu0
    %v1157 = vpop.f32.mrb[0].mxu0
    %1158 = vmatprep.mubr.f32.mxu0 0.0
    %1159 = vmatmul.mubr.f32.gmra.mrb[0].mxu0 %v1064
    %v1160 = vpop.f32.mrb[0].mxu0
    %v1161 = vpop.f32.mrb[0].mxu0
    %1162 = vmatprep.mubr.f32.mxu0 0.0
    %1163 = vmatmul.mubr.f32.gmra.mrb[0].mxu0 %v1067
    %v1164 = vpop.f32.mrb[0].mxu0
    %v1165 = vpop.f32.mrb[0].mxu0
    %1166 = vdwg.mxu0
    %v1168 = vrot.slane %v1136, 1
    %v1170 = vsub.f32 %v1136, %v1168
    %v1171 = vsub.f32 0.0, %v1170
    %v1172 = vmul.f32 %v1171, 1.442695
    %v1173 = vpow.pop %v1172
    %v1174 = vadd.f32 %v1173, 1.0
    %v1175 = vrcp.pop %v1174
    %1176 = vst [vmem:[#allocation2] sm:$0x1] %v1175
    %v1177 = vsub.f32 1.0, %v1175
    %1178 = vst [vmem:[#allocation2 + $0x1] sm:$0x1] %v1177
    // Predicated region
    $region18: #{tpu_custom_call.1} parent=1 // pred_check
      _
    $region19: #{tpu_custom_call.1} parent=1 // pred_check_branch
      %1180 = sbr.rel (0) target = $region21
    $region20: #{tpu_custom_call.1} parent=1 // pred_region
      %s1182 = ssub.s32 32, 32
      %1183 = vsyncadd [#allocation3], %s1182
      %s1185 = sshll.u32 [#allocation2], 4
      %s1186 = int_to_ptr.vmem [resolvable:$true] %s1185
      %1188 = dma.vmem_to_hbm [thread:$0]  %s1186, 32, %s4, [#allocation3]
    $region21: #{tpu_custom_call.1} parent=1 // pred_fallthru
      _
    // Predicated region
    $region22: #{tpu_custom_call.1} parent=1 // pred_check
      _
    $region23: #{tpu_custom_call.1} parent=1 // pred_check_branch
      %1190 = sbr.rel (0) target = $region25
    $region24: #{tpu_custom_call.1} parent=1 // pred_region
      %1191 = dma.done [#allocation3], 32
    $region25: #{tpu_custom_call.1} parent=1 // pred_fallthru
      _
    %1192 = vsyncpa [#allocation3], 1

</llo_original>
